<compile_context>
chip_gen: v5e
topology: v5e:2x2
jax: 0.10.0
libtpu: 0.0.40
codegen_flags: <defaults>
</compile_context>

<pallas_src>
import jax
import jax.numpy as jnp
from jax.experimental import pallas as pl
from jax.experimental.pallas import tpu as pltpu

SMOOTH = 1e-05
_LANES = 128                      # vreg lane width
_PAD_LOGIT = -1e9                 # sigmoid(_PAD_LOGIT) == 0.0 exactly in f32
_TARGET_TILE_ELEMS = 512 * 1024   # ~2 MiB of f32 per input per pipeline buffer
_MAX_TILE_ELEMS = 2 * 1024 * 1024  # hard cap: ~8 MiB f32 per input per buffer


def _round_up(x, m):
    return (x + m - 1) // m * m


def _dice_loss_kernel(x_ref, t_ref, o_ref, inter_acc, xs_acc, ts_acc):
    # x_ref, t_ref: (N, TILE_R, 128) blocks of the current reduction step.
    # o_ref: (1, 1) scalar loss.  Accumulators: (N, 128) f32 VMEM scratch.
    k = pl.program_id(0)
    nk = pl.num_programs(0)

    @pl.when(k == 0)
    def _init():
        inter_acc[...] = jnp.zeros_like(inter_acc)
        xs_acc[...] = jnp.zeros_like(xs_acc)
        ts_acc[...] = jnp.zeros_like(ts_acc)

    x = jax.nn.sigmoid(x_ref[...].astype(jnp.float32))    # (N, TILE_R, 128)
    t = t_ref[...].astype(jnp.float32)

    # Reduce the row (sublane) axis every step; keep lanes for the epilogue.
    inter_acc[...] += jnp.sum(x * t, axis=1)               # (N, 128)
    xs_acc[...] += jnp.sum(x, axis=1)
    ts_acc[...] += jnp.sum(t, axis=1)

    @pl.when(k == nk - 1)
    def _finalize():
        inter = jnp.sum(inter_acc[...], axis=1, keepdims=True)   # (N, 1)
        xs = jnp.sum(xs_acc[...], axis=1, keepdims=True)
        ts = jnp.sum(ts_acc[...], axis=1, keepdims=True)
        # Exact reciprocal keeps the result bit-close to the reference; the
        # epilogue runs once, so this is off the critical path.
        dice = (2.0 * inter + SMOOTH) * pl.reciprocal(xs + ts + SMOOTH,
                                                      approx=False)
        n = dice.shape[0]
        o_ref[...] = 1.0 - jnp.sum(dice, axis=0, keepdims=True) / n


def dice_loss(inp, target):
    """Pallas implementation of DiceLoss.forward. Returns a float32 scalar."""
    assert inp.shape == target.shape, (inp.shape, target.shape)
    n = inp.shape[0]
    x2d = inp.reshape(n, -1)
    t2d = target.reshape(n, -1)
    d = x2d.shape[1]

    # ---- Tiling plan: D -> (rows, 128); stream row-tiles over the grid. ----
    r_raw = pl.cdiv(d, _LANES)
    tile_elems = min(_TARGET_TILE_ELEMS, _MAX_TILE_ELEMS)
    tile_r = max(8, (tile_elems // (n * _LANES)) // 8 * 8)
    if r_raw <= tile_r:
        tile_r = r_raw            # single step; full-extent block is legal
        r_pad = r_raw
    else:
        r_pad = _round_up(r_raw, tile_r)
    k_steps = r_pad // tile_r
    d_pad = r_pad * _LANES

    if d_pad != d:
        # Pad logits with a huge negative (sigmoid -> exactly 0) and the mask
        # with zeros so padding contributes nothing to any of the sums.
        x2d = jnp.pad(x2d, ((0, 0), (0, d_pad - d)),
                      constant_values=_PAD_LOGIT)
        t2d = jnp.pad(t2d, ((0, 0), (0, d_pad - d)), constant_values=0)

    x3d = x2d.reshape(n, r_pad, _LANES)
    t3d = t2d.reshape(n, r_pad, _LANES)

    blk = (n, tile_r, _LANES)
    cost = pl.CostEstimate(
        flops=5 * n * d_pad,
        transcendentals=n * d_pad,
        bytes_accessed=x3d.size * x3d.dtype.itemsize
        + t3d.size * t3d.dtype.itemsize + 4,
    )

    out = pl.pallas_call(
        _dice_loss_kernel,
        out_shape=jax.ShapeDtypeStruct((1, 1), jnp.float32),
        grid_spec=pltpu.PrefetchScalarGridSpec(
            num_scalar_prefetch=0,
            grid=(k_steps,),
            in_specs=[
                pl.BlockSpec(blk, lambda k: (0, k, 0)),
                pl.BlockSpec(blk, lambda k: (0, k, 0)),
            ],
            out_specs=pl.BlockSpec((1, 1), lambda k: (0, 0)),
            scratch_shapes=[
                pltpu.VMEM((n, _LANES), jnp.float32),   # intersection partials
                pltpu.VMEM((n, _LANES), jnp.float32),   # sum(sigmoid(x)) partials
                pltpu.VMEM((n, _LANES), jnp.float32),   # sum(target) partials
            ],
        ),
        compiler_params=pltpu.CompilerParams(
            # Single reduction axis; the scalar output is an accumulator.
            dimension_semantics=("arbitrary",),
            vmem_limit_bytes=32 * 1024 * 1024,
        ),
        cost_estimate=cost,
    )(x3d, t3d)
    return out[0, 0]


def _dice_loss_ref(inp, target):
    # Pure-JAX reference mirroring the PyTorch module.
    n = inp.shape[0]
    x = jax.nn.sigmoid(inp.astype(jnp.float32)).reshape(n, -1)
    t = target.astype(jnp.float32).reshape(n, -1)
    inter = jnp.sum(x * t, axis=1)
    dice = (2.0 * inter + SMOOTH) / (jnp.sum(x, axis=1) + jnp.sum(t, axis=1) + SMOOTH)
    return 1.0 - jnp.sum(dice) / n


if __name__ == "__main__":
    key = jax.random.PRNGKey(0)
    k1, k2 = jax.random.split(key)
    # Small NCHW shapes: batch=2, channels=4, spatial=16x16.
    logits = jax.random.normal(k1, (2, 4, 16, 16), dtype=jnp.float32)
    # Binary mask passed as bf16 (0/1 exactly representable) to halve its HBM
    # traffic; the kernel upcasts to f32 internally.
    target = (jax.random.uniform(k2, (2, 4, 16, 16)) > 0.5).astype(jnp.bfloat16)

    loss = dice_loss(logits, target)
    jax.block_until_ready(loss)

    ref = _dice_loss_ref(logits, target)
    assert jnp.allclose(loss, ref, atol=1e-5, rtol=1e-5), (loss, ref)
    print("KERNEL_OK")
</pallas_src>

<mosaic_0001>
module attributes {stable_mosaic.version = 11 : i64} {
  func.func @_dice_loss_kernel(%arg0: i32, %arg1: memref<2x8x128xf32, #tpu.memory_space<vmem>>, %arg2: memref<2x8x128xbf16, #tpu.memory_space<vmem>>, %arg3: memref<1x1xf32, #tpu.memory_space<vmem>>, %arg4: memref<2x128xf32, #tpu.memory_space<vmem>>, %arg5: memref<2x128xf32, #tpu.memory_space<vmem>>, %arg6: memref<2x128xf32, #tpu.memory_space<vmem>>) attributes {dimension_semantics = [#tpu.dimension_semantics<arbitrary>], iteration_bounds = array<i64: 1>, scalar_prefetch = 0 : i64, scratch_operands = 3 : i64, tpu.core_type = #tpu.core_type<tc>, window_params = [{transform_indices = @transform_0, window_bounds = array<i64: 2, 8, 128>}, {transform_indices = @transform_1, window_bounds = array<i64: 2, 8, 128>}, {pipeline_mode = #tpu.pipeline_mode<synchronous>, transform_indices = @transform_2, window_bounds = array<i64: 1, 1>}]} {
    %c0_i32 = arith.constant 0 : i32
    %0 = arith.cmpi eq, %arg0, %c0_i32 : i32
    %1 = arith.extui %0 : i1 to i32
    %c0_i32_0 = arith.constant 0 : i32
    %2 = arith.cmpi ne, %1, %c0_i32_0 : i32
    scf.if %2 {
      %cst_23 = arith.constant 0.000000e+00 : f32
      %27 = vector.broadcast %cst_23 : f32 to vector<2x128xf32>
      %c0_24 = arith.constant 0 : index
      %c0_25 = arith.constant 0 : index
      %28 = vector.load %arg4[%c0_24, %c0_25] : memref<2x128xf32, #tpu.memory_space<vmem>>, vector<2x128xf32>
      tpu.vector_store %arg4[%c0_24, %c0_25], %27 {strides = array<i32>} : memref<2x128xf32, #tpu.memory_space<vmem>>, vector<2x128xf32>,
      %cst_26 = arith.constant 0.000000e+00 : f32
      %29 = vector.broadcast %cst_26 : f32 to vector<2x128xf32>
      %c0_27 = arith.constant 0 : index
      %c0_28 = arith.constant 0 : index
      %30 = vector.load %arg5[%c0_27, %c0_28] : memref<2x128xf32, #tpu.memory_space<vmem>>, vector<2x128xf32>
      tpu.vector_store %arg5[%c0_27, %c0_28], %29 {strides = array<i32>} : memref<2x128xf32, #tpu.memory_space<vmem>>, vector<2x128xf32>,
      %cst_29 = arith.constant 0.000000e+00 : f32
      %31 = vector.broadcast %cst_29 : f32 to vector<2x128xf32>
      %c0_30 = arith.constant 0 : index
      %c0_31 = arith.constant 0 : index
      %32 = vector.load %arg6[%c0_30, %c0_31] : memref<2x128xf32, #tpu.memory_space<vmem>>, vector<2x128xf32>
      tpu.vector_store %arg6[%c0_30, %c0_31], %31 {strides = array<i32>} : memref<2x128xf32, #tpu.memory_space<vmem>>, vector<2x128xf32>,
    } else {
    }
    %c0 = arith.constant 0 : index
    %c0_1 = arith.constant 0 : index
    %c0_2 = arith.constant 0 : index
    %3 = vector.load %arg1[%c0, %c0_1, %c0_2] : memref<2x8x128xf32, #tpu.memory_space<vmem>>, vector<2x8x128xf32>
    %4 = arith.negf %3 : vector<2x8x128xf32>
    %5 = math.exp %4 : vector<2x8x128xf32>
    %cst = arith.constant 1.000000e+00 : f32
    %6 = vector.broadcast %cst : f32 to vector<2x8x128xf32>
    %7 = arith.addf %6, %5 : vector<2x8x128xf32>
    %8 = arith.divf %6, %7 : vector<2x8x128xf32>
    %c0_3 = arith.constant 0 : index
    %c0_4 = arith.constant 0 : index
    %c0_5 = arith.constant 0 : index
    %9 = vector.load %arg2[%c0_3, %c0_4, %c0_5] : memref<2x8x128xbf16, #tpu.memory_space<vmem>>, vector<2x8x128xbf16>
    %10 = arith.extf %9 : vector<2x8x128xbf16> to vector<2x8x128xf32>
    %c0_6 = arith.constant 0 : index
    %c0_7 = arith.constant 0 : index
    %11 = vector.load %arg4[%c0_6, %c0_7] : memref<2x128xf32, #tpu.memory_space<vmem>>, vector<2x128xf32>
    %12 = arith.mulf %8, %10 : vector<2x8x128xf32>
    %cst_8 = arith.constant dense<0.000000e+00> : vector<2x128xf32>
    %13 = vector.multi_reduction <add>, %12, %cst_8 [1] : vector<2x8x128xf32> to vector<2x128xf32>
    %14 = arith.addf %11, %13 : vector<2x128xf32>
    %c0_9 = arith.constant 0 : index
    %c0_10 = arith.constant 0 : index
    %15 = vector.load %arg4[%c0_9, %c0_10] : memref<2x128xf32, #tpu.memory_space<vmem>>, vector<2x128xf32>
    tpu.vector_store %arg4[%c0_9, %c0_10], %14 {strides = array<i32>} : memref<2x128xf32, #tpu.memory_space<vmem>>, vector<2x128xf32>,
    %c0_11 = arith.constant 0 : index
    %c0_12 = arith.constant 0 : index
    %16 = vector.load %arg5[%c0_11, %c0_12] : memref<2x128xf32, #tpu.memory_space<vmem>>, vector<2x128xf32>
    %cst_13 = arith.constant dense<0.000000e+00> : vector<2x128xf32>
    %17 = vector.multi_reduction <add>, %8, %cst_13 [1] : vector<2x8x128xf32> to vector<2x128xf32>
    %18 = arith.addf %16, %17 : vector<2x128xf32>
    %c0_14 = arith.constant 0 : index
    %c0_15 = arith.constant 0 : index
    %19 = vector.load %arg5[%c0_14, %c0_15] : memref<2x128xf32, #tpu.memory_space<vmem>>, vector<2x128xf32>
    tpu.vector_store %arg5[%c0_14, %c0_15], %18 {strides = array<i32>} : memref<2x128xf32, #tpu.memory_space<vmem>>, vector<2x128xf32>,
    %c0_16 = arith.constant 0 : index
    %c0_17 = arith.constant 0 : index
    %20 = vector.load %arg6[%c0_16, %c0_17] : memref<2x128xf32, #tpu.memory_space<vmem>>, vector<2x128xf32>
    %cst_18 = arith.constant dense<0.000000e+00> : vector<2x128xf32>
    %21 = vector.multi_reduction <add>, %10, %cst_18 [1] : vector<2x8x128xf32> to vector<2x128xf32>
    %22 = arith.addf %20, %21 : vector<2x128xf32>
    %c0_19 = arith.constant 0 : index
    %c0_20 = arith.constant 0 : index
    %23 = vector.load %arg6[%c0_19, %c0_20] : memref<2x128xf32, #tpu.memory_space<vmem>>, vector<2x128xf32>
    tpu.vector_store %arg6[%c0_19, %c0_20], %22 {strides = array<i32>} : memref<2x128xf32, #tpu.memory_space<vmem>>, vector<2x128xf32>,
    %c0_i32_21 = arith.constant 0 : i32
    %24 = arith.cmpi eq, %arg0, %c0_i32_21 : i32
    %25 = arith.extui %24 : i1 to i32
    %c0_i32_22 = arith.constant 0 : i32
    %26 = arith.cmpi ne, %25, %c0_i32_22 : i32
    scf.if %26 {
      %c0_23 = arith.constant 0 : index
      %c0_24 = arith.constant 0 : index
      %27 = vector.load %arg4[%c0_23, %c0_24] : memref<2x128xf32, #tpu.memory_space<vmem>>, vector<2x128xf32>
      %cst_25 = arith.constant dense<0.000000e+00> : vector<2xf32>
      %28 = vector.multi_reduction <add>, %27, %cst_25 [1] : vector<2x128xf32> to vector<2xf32>
      %29 = vector.shape_cast %28 : vector<2xf32> to vector<2x1xf32>
      %c0_26 = arith.constant 0 : index
      %c0_27 = arith.constant 0 : index
      %30 = vector.load %arg5[%c0_26, %c0_27] : memref<2x128xf32, #tpu.memory_space<vmem>>, vector<2x128xf32>
      %cst_28 = arith.constant dense<0.000000e+00> : vector<2xf32>
      %31 = vector.multi_reduction <add>, %30, %cst_28 [1] : vector<2x128xf32> to vector<2xf32>
      %32 = vector.shape_cast %31 : vector<2xf32> to vector<2x1xf32>
      %c0_29 = arith.constant 0 : index
      %c0_30 = arith.constant 0 : index
      %33 = vector.load %arg6[%c0_29, %c0_30] : memref<2x128xf32, #tpu.memory_space<vmem>>, vector<2x128xf32>
      %cst_31 = arith.constant dense<0.000000e+00> : vector<2xf32>
      %34 = vector.multi_reduction <add>, %33, %cst_31 [1] : vector<2x128xf32> to vector<2xf32>
      %35 = vector.shape_cast %34 : vector<2xf32> to vector<2x1xf32>
      %cst_32 = arith.constant 2.000000e+00 : f32
      %36 = vector.broadcast %cst_32 : f32 to vector<2x1xf32>
      %37 = arith.mulf %36, %29 : vector<2x1xf32>
      %cst_33 = arith.constant 9.99999974E-6 : f32
      %38 = vector.broadcast %cst_33 : f32 to vector<2x1xf32>
      %39 = arith.addf %37, %38 : vector<2x1xf32>
      %40 = arith.addf %32, %35 : vector<2x1xf32>
      %cst_34 = arith.constant 9.99999974E-6 : f32
      %41 = vector.broadcast %cst_34 : f32 to vector<2x1xf32>
      %42 = arith.addf %40, %41 : vector<2x1xf32>
      %43 = tpu.reciprocal %42 : vector<2x1xf32> -> vector<2x1xf32>
      %44 = arith.mulf %39, %43 : vector<2x1xf32>
      %cst_35 = arith.constant dense<0.000000e+00> : vector<1xf32>
      %45 = vector.multi_reduction <add>, %44, %cst_35 [0] : vector<2x1xf32> to vector<1xf32>
      %46 = vector.shape_cast %45 : vector<1xf32> to vector<1x1xf32>
      %cst_36 = arith.constant 2.000000e+00 : f32
      %47 = vector.broadcast %cst_36 : f32 to vector<1x1xf32>
      %48 = arith.divf %46, %47 : vector<1x1xf32>
      %cst_37 = arith.constant 1.000000e+00 : f32
      %49 = vector.broadcast %cst_37 : f32 to vector<1x1xf32>
      %50 = arith.subf %49, %48 : vector<1x1xf32>
      %c0_38 = arith.constant 0 : index
      %c0_39 = arith.constant 0 : index
      %51 = vector.load %arg3[%c0_38, %c0_39] : memref<1x1xf32, #tpu.memory_space<vmem>>, vector<1x1xf32>
      tpu.vector_store %arg3[%c0_38, %c0_39], %50 {strides = array<i32>} : memref<1x1xf32, #tpu.memory_space<vmem>>, vector<1x1xf32>,
    } else {
    }
    return
  }
  func.func @transform_0(%arg0: i32) -> (i32, i32, i32) {
    %c0_i32 = arith.constant 0 : i32
    %c0_i32_0 = arith.constant 0 : i32
    %c0_i32_1 = arith.constant 0 : i32
    return %c0_i32, %arg0, %c0_i32_0 : i32, i32, i32
  }
  func.func @transform_1(%arg0: i32) -> (i32, i32, i32) {
    %c0_i32 = arith.constant 0 : i32
    %c0_i32_0 = arith.constant 0 : i32
    %c0_i32_1 = arith.constant 0 : i32
    return %c0_i32, %arg0, %c0_i32_0 : i32, i32, i32
  }
  func.func @transform_2(%arg0: i32) -> (i32, i32) {
    %c0_i32 = arith.constant 0 : i32
    %c0_i32_0 = arith.constant 0 : i32
    %c0_i32_1 = arith.constant 0 : i32
    return %c0_i32, %c0_i32_0 : i32, i32
  }
}

</mosaic_0001>

<llo_original>
// kernel: tpu_custom_call.1
$region0: #{tpu_custom_call.1}
  #allocation0 [shape = 'u32[]', space=smem, size = 0x4, offset = 0x4, fixed_abs, tag = 'smem constant byte address 0x4 - core index']
  #allocation1 [shape = 'u32[72,128]{1,0:T(1,128)}', space=vmem, size = 0x9000, scoped, tag = 'internal scratch']
  #allocation2 [shape = 'f32[2,128]{1,0:T(2,128)}', space=vmem, size = 0x400, scoped, tag = 'scratch operand']
  #allocation3 [shape = 'f32[2,128]{1,0:T(2,128)}', space=vmem, size = 0x400, scoped, tag = 'scratch operand']
  #allocation4 [shape = 'f32[2,128]{1,0:T(2,128)}', space=vmem, size = 0x400, scoped, tag = 'scratch operand']
  %s0 = inlined_call_operand.hbm [shape: f32[2,8,128], index: 0, kind: input, shape index: {}]
  %s1 = inlined_call_operand.hbm [shape: bf16[2,8,128], index: 1, kind: input, shape index: {}]
  %s2 = inlined_call_operand.hbm [shape: f32[1,1], index: 2, kind: output, shape index: {}]
  %s3 = sld [smem:[#allocation0]]
  $region34: #{tpu_custom_call.1} parent=0
    _
  %s5 = ssub.s32 1, %s3
  %s6 = scalar_select 0, %s5, %s3
  $region1: #{tpu_custom_call.1} parent=0
    #allocation5 [shape = 'u8[8192]{0}', space=vmem, size = 0x2000, scoped, tag = 'input window, operand 0, single buffered']
    #allocation6 [shape = 's32[1]{0}', space=sflag, size = 0x4, scoped, tag = 'scoped memory for tpu_custom_call.1']
    #allocation7 [shape = 's32[1]{0}', space=sflag, size = 0x4, scoped, tag = 'scoped memory for tpu_custom_call.1']
    #allocation8 [shape = 'u8[4096]{0}', space=vmem, size = 0x1000, scoped, tag = 'input window, operand 1, single buffered']
    #allocation9 [shape = 's32[1]{0}', space=sflag, size = 0x4, scoped, tag = 'scoped memory for tpu_custom_call.1']
    #allocation10 [shape = 'u8[512]{0}', space=vmem, size = 0x400, scoped, tag = 'output window, operand 0, single buffered']
    %7 = vsyncpa [#allocation6], 0
    %8 = vsyncpa [#allocation9], 0
    %9 = vsyncpa [#allocation7], 0
    // Predicated region
    $region2: #{tpu_custom_call.1} parent=1 // pred_check
      _
    $region3: #{tpu_custom_call.1} parent=1 // pred_check_branch
      %11 = sbr.rel (0) target = $region5
    $region4: #{tpu_custom_call.1} parent=1 // pred_region
      %13 = vsyncadd [#allocation6], 0
      %s14 = sshll.u32 %s0, 4
      %s15 = int_to_ptr.hbm [resolvable:$true] %s14
      %s16 = sshll.u32 [#allocation5], 4
      %s17 = int_to_ptr.vmem [resolvable:$true] %s16
      %22 = dma.hbm_to_vmem [thread:$0]  %s15, 256, %s17, [#allocation6], 128, 128, 8
    $region5: #{tpu_custom_call.1} parent=1 // pred_fallthru
      _
    // Predicated region
    $region6: #{tpu_custom_call.1} parent=1 // pred_check
      _
    $region7: #{tpu_custom_call.1} parent=1 // pred_check_branch
      %24 = sbr.rel (0) target = $region9
    $region8: #{tpu_custom_call.1} parent=1 // pred_region
      %26 = vsyncadd [#allocation9], 0
      %s27 = sshll.u32 %s1, 4
      %s28 = int_to_ptr.hbm [resolvable:$true] %s27
      %s29 = sshll.u32 [#allocation8], 4
      %s30 = int_to_ptr.vmem [resolvable:$true] %s29
      %35 = dma.hbm_to_vmem [thread:$0]  %s28, 128, %s30, [#allocation9], 64, 64, 4
    $region9: #{tpu_custom_call.1} parent=1 // pred_fallthru
      _
    // Predicated region
    $region10: #{tpu_custom_call.1} parent=1 // pred_check
      _
    $region11: #{tpu_custom_call.1} parent=1 // pred_check_branch
      %37 = sbr.rel (0) target = $region13
    $region12: #{tpu_custom_call.1} parent=1 // pred_region
      %39 = dma.done [#allocation6], 256
    $region13: #{tpu_custom_call.1} parent=1 // pred_fallthru
      _
    // Predicated region
    $region14: #{tpu_custom_call.1} parent=1 // pred_check
      _
    $region15: #{tpu_custom_call.1} parent=1 // pred_check_branch
      %41 = sbr.rel (0) target = $region17
    $region16: #{tpu_custom_call.1} parent=1 // pred_region
      %43 = dma.done [#allocation9], 128
    $region17: #{tpu_custom_call.1} parent=1 // pred_fallthru
      _
    %p44 = scmp.eq.s32.totalorder 0, 0
    // Predicated region
    $region18: #{tpu_custom_call.1} parent=1 // pred_check
      %p45 = pneg %p44
    $region19: #{tpu_custom_call.1} parent=1 // pred_check_branch
      %47 = sbr.rel (%p45) target = $region21
    $region20: #{tpu_custom_call.1} parent=1 // pred_region
      %48 = vst [vmem:[#allocation2] sm:$0x3] 0.0
      %49 = vst [vmem:[#allocation3] sm:$0x3] 0.0
      %50 = vst [vmem:[#allocation4] sm:$0x3] 0.0
    $region21: #{tpu_custom_call.1} parent=1 // pred_fallthru
      _
    %v51 = vld [vmem:[#allocation5] sm:$0xff]
    %v52 = vld [vmem:[#allocation5 + $0x8] sm:$0xff]
    %v53 = vxor.u32 %v51, 2147483648
    %v54 = vxor.u32 %v52, 2147483648
    %v55 = vmul.f32 %v53, 1.442695
    %v56 = vpow.pop %v55
    %v57 = vmul.f32 %v54, 1.442695
    %v58 = vpow.pop %v57
    %v59 = vadd.f32 %v56, 1.0
    %v60 = vadd.f32 %v58, 1.0
    %v61 = vrcp.pop %v59
    %v62 = vmul.f32 %v59, %v61
    %v63 = vsub.f32 1.0, %v62
    %v64 = vmul.f32 %v61, %v63
    %v65 = vadd.f32 %v61, %v64
    %vm66 = vweird.f32 %v59
    %vm67 = vweird.f32 %v61
    %vm68 = vmor %vm66, %vm67
    %v69 = vsel %vm68, %v61, %v65
    %v70 = vand.u32 2147483647, %v59
    %vm71 = vcmp.eq.f32.partialorder %v70, 8.507059e+37
    %v72 = vand.u32 %v59, 2147483648
    %v73 = vor.u32 1.1754944e-38, %v72
    %v74 = vsel %vm71, %v73, %v69
    %v75 = vmul.f32 1.0, %v74
    %v76 = vrcp.pop %v60
    %v77 = vmul.f32 %v60, %v76
    %v78 = vsub.f32 1.0, %v77
    %v79 = vmul.f32 %v76, %v78
    %v80 = vadd.f32 %v76, %v79
    %vm81 = vweird.f32 %v60
    %vm82 = vweird.f32 %v76
    %vm83 = vmor %vm81, %vm82
    %v84 = vsel %vm83, %v76, %v80
    %v85 = vand.u32 2147483647, %v60
    %vm86 = vcmp.eq.f32.partialorder %v85, 8.507059e+37
    %v87 = vand.u32 %v60, 2147483648
    %v88 = vor.u32 1.1754944e-38, %v87
    %v89 = vsel %vm86, %v88, %v84
    %v90 = vmul.f32 1.0, %v89
    %v91 = vld [vmem:[#allocation8] sm:$0xf]
    %v92 = vld [vmem:[#allocation8 + $0x4] sm:$0xf]
    %v93 = vunpack.c.l.bf16 %v91
    %v94 = vunpack.c.l.bf16 %v92
    %v95 = vld [vmem:[#allocation2] sm:$0x3]
    %v96 = vmul.f32 %v75, %v93
    %v97 = vmul.f32 %v90, %v94
    %v98 = vrot.slane %v96, 4
    %v99 = vadd.f32 %v96, %v98
    %v100 = vrot.slane %v99, 2
    %v101 = vadd.f32 %v99, %v100
    %v102 = vrot.slane %v101, 1
    %v103 = vadd.f32 %v101, %v102
    %v104 = vrot.slane %v97, 4
    %v105 = vadd.f32 %v97, %v104
    %v106 = vrot.slane %v105, 2
    %v107 = vadd.f32 %v105, %v106
    %v108 = vrot.slane %v107, 1
    %v109 = vadd.f32 %v107, %v108
    %vm112 = vcmask 1041409
    %v113 = vsel %vm112, %v109, %v103
    %v115 = vadd.f32 %v95, %v113
    %116 = vst [vmem:[#allocation2] sm:$0x3] %v115
    %v117 = vld [vmem:[#allocation3] sm:$0x3]
    %v118 = vrot.slane %v75, 4
    %v119 = vadd.f32 %v75, %v118
    %v120 = vrot.slane %v119, 2
    %v121 = vadd.f32 %v119, %v120
    %v122 = vrot.slane %v121, 1
    %v123 = vadd.f32 %v121, %v122
    %v124 = vrot.slane %v90, 4
    %v125 = vadd.f32 %v90, %v124
    %v126 = vrot.slane %v125, 2
    %v127 = vadd.f32 %v125, %v126
    %v128 = vrot.slane %v127, 1
    %v129 = vadd.f32 %v127, %v128
    %v132 = vsel %vm112, %v129, %v123
    %v134 = vadd.f32 %v117, %v132
    %135 = vst [vmem:[#allocation3] sm:$0x3] %v134
    %v136 = vld [vmem:[#allocation4] sm:$0x3]
    %v137 = vrot.slane %v93, 4
    %v138 = vadd.f32 %v93, %v137
    %v139 = vrot.slane %v138, 2
    %v140 = vadd.f32 %v138, %v139
    %v141 = vrot.slane %v140, 1
    %v142 = vadd.f32 %v140, %v141
    %v143 = vrot.slane %v94, 4
    %v144 = vadd.f32 %v94, %v143
    %v145 = vrot.slane %v144, 2
    %v146 = vadd.f32 %v144, %v145
    %v147 = vrot.slane %v146, 1
    %v148 = vadd.f32 %v146, %v147
    %v151 = vsel %vm112, %v148, %v142
    %v153 = vadd.f32 %v136, %v151
    %154 = vst [vmem:[#allocation4] sm:$0x3] %v153
    // Predicated region
    $region22: #{tpu_custom_call.1} parent=1 // pred_check
      %p155 = pneg %p44
    $region23: #{tpu_custom_call.1} parent=1 // pred_check_branch
      %157 = sbr.rel (%p155) target = $region25
    $region24: #{tpu_custom_call.1} parent=1 // pred_region
      %v158 = vld [vmem:[#allocation2] sm:$0x3]
      %vm159 = vcmask 1041408
      %v160 = vsel %vm159, %v158, 0.0
      %161 = vadd.xlane.f32.xlu0 %v160
      %v162 = vpop.xlane.xlu0 %161
      %v163 = vld [vmem:[#allocation3] sm:$0x3]
      %v164 = vsel %vm159, %v163, 0.0
      %165 = vadd.xlane.f32.xlu0 %v164
      %v166 = vpop.xlane.xlu0 %165
      %v167 = vld [vmem:[#allocation4] sm:$0x3]
      %v168 = vsel %vm159, %v167, 0.0
      %169 = vadd.xlane.f32.xlu0 %v168
      %v170 = vpop.xlane.xlu0 %169
      %v171 = vmul.f32 %v162, 2.0
      %v172 = vadd.f32 %v171, 1e-05
      %v173 = vadd.f32 %v166, %v170
      %v174 = vadd.f32 %v173, 1e-05
      %v175 = vrcp.pop %v174
      %v176 = vmul.f32 %v174, %v175
      %v177 = vsub.f32 1.0, %v176
      %v178 = vmul.f32 %v175, %v177
      %v179 = vadd.f32 %v175, %v178
      %vm180 = vweird.f32 %v174
      %vm181 = vweird.f32 %v175
      %vm182 = vmor %vm180, %vm181
      %v183 = vsel %vm182, %v175, %v179
      %v184 = vand.u32 2147483647, %v174
      %vm185 = vcmp.eq.f32.partialorder %v184, 8.507059e+37
      %v186 = vand.u32 %v174, 2147483648
      %v187 = vor.u32 1.1754944e-38, %v186
      %v188 = vsel %vm185, %v187, %v183
      %v189 = vmul.f32 %v172, %v188
      %v190 = vsel %vm159, %v189, 0.0
      %v191 = vrot.slane %v190, 4
      %v192 = vadd.f32 %v190, %v191
      %v193 = vrot.slane %v192, 2
      %v194 = vadd.f32 %v192, %v193
      %v195 = vrot.slane %v194, 1
      %v196 = vadd.f32 %v194, %v195
      %v197 = vrcp.pop 2.0
      %v198 = vmul.f32 2.0, %v197
      %v199 = vsub.f32 1.0, %v198
      %v200 = vmul.f32 %v197, %v199
      %v201 = vadd.f32 %v197, %v200
      %vm202 = vweird.f32 %v197
      %v203 = vsel %vm202, %v197, %v201
      %v204 = vmul.f32 %v196, %v203
      %v205 = vsub.f32 1.0, %v204
      %vm206 = vcmask 0
      %207 = vst.msk [vmem:[#allocation10] sm:$0x1] %vm206, %v205
    $region25: #{tpu_custom_call.1} parent=1 // pred_fallthru
      _
    // Predicated region
    $region26: #{tpu_custom_call.1} parent=1 // pred_check
      _
    $region27: #{tpu_custom_call.1} parent=1 // pred_check_branch
      %209 = sbr.rel (0) target = $region29
    $region28: #{tpu_custom_call.1} parent=1 // pred_region
      %211 = vsyncadd [#allocation7], 0
      %s213 = sshll.u32 [#allocation10], 4
      %s214 = int_to_ptr.vmem [resolvable:$true] %s213
      %s215 = sshll.u32 %s2, 4
      %s216 = int_to_ptr.hbm [resolvable:$true] %s215
      %218 = dma.vmem_to_hbm [thread:$0]  %s214, 16, %s216, [#allocation7]
    $region29: #{tpu_custom_call.1} parent=1 // pred_fallthru
      _
    // Predicated region
    $region30: #{tpu_custom_call.1} parent=1 // pred_check
      _
    $region31: #{tpu_custom_call.1} parent=1 // pred_check_branch
      %220 = sbr.rel (0) target = $region33
    $region32: #{tpu_custom_call.1} parent=1 // pred_region
      %222 = dma.done [#allocation7], 16
    $region33: #{tpu_custom_call.1} parent=1 // pred_fallthru
      _
    %223 = vsyncpa [#allocation6], 1
    %224 = vsyncpa [#allocation9], 1
    %225 = vsyncpa [#allocation7], 1

</llo_original>
